<compile_context>
chip_gen: v5e
topology: v5e:2x2
jax: 0.10.0
libtpu: 0.0.40
codegen_flags: <defaults>
</compile_context>

<pallas_src>
import numpy as np

import jax
import jax.numpy as jnp
from jax.experimental import pallas as pl
from jax.experimental.pallas import tpu as pltpu


def _grouped_matmul_kernel(x_ref, w_ref, o_ref):
    # x_ref: (1, GB, M, K)       im2col activations for GB groups of one batch item
    # w_ref: (GB, K, Cout_g)     flattened weights (resident across the inner N loop)
    # o_ref: (1, GB, M, Cout_g)  lane-dense output slab
    gb = w_ref.shape[0]
    for g in range(gb):  # static unroll: one MXU matmul + store per group
        o_ref[0, g] = jnp.dot(
            x_ref[0, g], w_ref[g], preferred_element_type=jnp.float32
        ).astype(o_ref.dtype)


def prepare_weights(weight, *, groups, compute_dtype=jnp.bfloat16):
    """One-time weight relayout + cast (hoisted off the per-call hot path).

    (G*Cout_g, Cin_g, KH, KW) -> (G, KH*KW*Cin_g, Cout_g), bf16.
    Flattened K axis ordered (kh, kw, cin) to match the wrapper im2col.
    """
    Cout_total, Cin_g, KH, KW = weight.shape
    G = groups
    Cout_g = Cout_total // G
    wg = weight.reshape(G, Cout_g, Cin_g, KH, KW)
    wg = wg.transpose(0, 3, 4, 2, 1)                 # (G, KH, KW, Cin_g, Cout_g)
    wg = wg.reshape(G, KH * KW * Cin_g, Cout_g)
    return wg.astype(compute_dtype)


def _pick_groups_per_block(G, M, Kdim, Cout_g, in_itemsize, out_itemsize,
                           vmem_budget_bytes):
    """Largest divisor of G whose double-buffered blocks fit the VMEM budget,
    keeping at least 2 blocks on grid axis 0 (megacore needs >=2 to split)."""
    best = 1
    for gb in range(1, G + 1):
        if G % gb:
            continue
        if G > 1 and G // gb < 2:
            continue
        per_step = gb * (M * Kdim * in_itemsize          # activation block
                         + Kdim * Cout_g * in_itemsize   # weight block
                         + M * Cout_g * out_itemsize)    # output block
        if 2 * per_step <= vmem_budget_bytes:            # double-buffered
            best = gb
    return best


def grouped_conv2d(x_nchw, wg, *, groups, kernel_size=3, stride=2, padding=1,
                   groups_per_block=None, compute_dtype=jnp.bfloat16,
                   out_dtype=jnp.float32, vmem_budget_bytes=28 * 2**20):
    """Equivalent of nn.Conv2d(C, C, 3, stride=2, padding=1, groups=G, bias=False).

    `wg` must come from prepare_weights (already laid out + cast)."""
    N, C, H, W = x_nchw.shape
    G = groups
    KH = KW = kernel_size
    Cin_g = C // G
    Kdim, Cout_g = wg.shape[1], wg.shape[2]
    assert Kdim == KH * KW * Cin_g

    Ho = (H + 2 * padding - KH) // stride + 1
    Wo = (W + 2 * padding - KW) // stride + 1
    M = Ho * Wo

    in_itemsize = np.dtype(compute_dtype).itemsize
    out_itemsize = np.dtype(out_dtype).itemsize
    GB = groups_per_block or _pick_groups_per_block(
        G, M, Kdim, Cout_g, in_itemsize, out_itemsize, vmem_budget_bytes)
    assert G % GB == 0

    # Scoped VMEM to cover double-buffered blocks with headroom; stay under
    # v7x's 64 MiB physical VMEM (v5e/v6e have 128 MiB physical).
    per_step_bytes = 2 * GB * (M * Kdim * in_itemsize
                               + Kdim * Cout_g * in_itemsize
                               + M * Cout_g * out_itemsize)
    vmem_limit = int(min(max(per_step_bytes * 1.5, 32 * 2**20), 56 * 2**20))

    # --- wrapper-side im2col (lane-aligned; nothing strided left for the kernel).
    # Cast to bf16 *before* pad/slice/stack so every intermediate is half-size.
    # (An in-kernel 9-tap formulation would also avoid materializing xcol, but
    # needs strided in-kernel loads + reshapes with less robust lowering; kept
    # wrapper-side + bf16 for reliability.)
    xg = x_nchw.reshape(N, G, Cin_g, H, W).transpose(0, 1, 3, 4, 2)
    xg = xg.astype(compute_dtype)
    xg = jnp.pad(xg, ((0, 0), (0, 0), (padding, padding), (padding, padding), (0, 0)))
    taps = []
    for kh in range(KH):
        for kw in range(KW):
            taps.append(
                jax.lax.slice(
                    xg,
                    (0, 0, kh, kw, 0),
                    (N, G,
                     kh + (Ho - 1) * stride + 1,
                     kw + (Wo - 1) * stride + 1,
                     Cin_g),
                    (1, 1, stride, stride, 1),
                ))
    xcol = jnp.stack(taps, axis=4)                    # (N, G, Ho, Wo, KH*KW, Cin_g)
    xcol = xcol.reshape(N, G, M, Kdim)

    flops = 2 * N * G * M * Cout_g * Kdim
    bytes_accessed = int(wg.size * wg.dtype.itemsize
                         + xcol.size * in_itemsize
                         + N * G * M * Cout_g * out_itemsize)

    out = pl.pallas_call(
        _grouped_matmul_kernel,
        out_shape=jax.ShapeDtypeStruct((N, G, M, Cout_g), out_dtype),
        grid_spec=pltpu.PrefetchScalarGridSpec(
            num_scalar_prefetch=0,
            # N innermost ("arbitrary") -> the weight block index is constant across
            # the inner loop, so each group-block's weights are DMA'd once, not N times.
            grid=(G // GB, N),
            in_specs=[
                pl.BlockSpec((1, GB, M, Kdim), lambda g, n: (n, g, 0, 0)),
                pl.BlockSpec((GB, Kdim, Cout_g), lambda g, n: (g, 0, 0)),
            ],
            out_specs=pl.BlockSpec((1, GB, M, Cout_g), lambda g, n: (n, g, 0, 0)),
        ),
        compiler_params=pltpu.CompilerParams(
            # Shard only the group axis across TensorCores: each core then owns a
            # disjoint slice of the (dominant) weight HBM traffic.
            dimension_semantics=("parallel", "arbitrary"),
            vmem_limit_bytes=vmem_limit,
        ),
        cost_estimate=pl.CostEstimate(
            flops=flops, transcendentals=0, bytes_accessed=bytes_accessed),
    )(xcol, wg)

    # Unflatten + NCHW in the wrapper (keeps the in-kernel store lane-dense).
    out = out.reshape(N, G, Ho, Wo, Cout_g).transpose(0, 1, 4, 2, 3)
    return out.reshape(N, G * Cout_g, Ho, Wo)


if __name__ == "__main__":
    # Small shapes consistent with the module's structure
    # (module: N=1, C=7392, groups=28, Cin_g=Cout_g=264, H=W=14
    #  -> here: N=2, C=32, groups=4, Cin_g=Cout_g=8, H=W=14).
    N, G, Cin_g, H, W = 2, 4, 8, 14, 14
    C = G * Cin_g
    Cout_g = Cin_g
    KH = KW = 3

    key = jax.random.PRNGKey(0)
    kx, kw = jax.random.split(key)
    x = jax.random.normal(kx, (N, C, H, W), dtype=jnp.float32)
    # nn.Conv2d weight shape: (Cout, Cin/groups, KH, KW)
    weight = jax.random.normal(kw, (G * Cout_g, Cin_g, KH, KW), dtype=jnp.float32) * 0.05

    # One-time weight relayout + bf16 cast (off the hot path).
    wg = prepare_weights(weight, groups=G)
    wg = jax.block_until_ready(wg)

    conv = jax.jit(lambda xx: grouped_conv2d(xx, wg, groups=G, stride=2, padding=1))
    y = jax.block_until_ready(conv(x))

    # Reference check against XLA's grouped conv (f32); tolerance loosened for
    # the bf16 weight/activation cast (accumulation is still f32).
    y_ref = jax.lax.conv_general_dilated(
        x, weight,
        window_strides=(2, 2),
        padding=((1, 1), (1, 1)),
        dimension_numbers=("NCHW", "OIHW", "NCHW"),
        feature_group_count=G,
    )
    assert y.shape == (N, C, H // 2, W // 2), y.shape
    assert y.dtype == jnp.float32, y.dtype
    assert jnp.allclose(y, y_ref, rtol=5e-2, atol=2e-2), "mismatch vs reference conv"

    print("KERNEL_OK")
</pallas_src>

<mosaic_0001>
module attributes {stable_mosaic.version = 11 : i64} {
  func.func @_grouped_matmul_kernel(%arg0: i32, %arg1: i32, %arg2: memref<1x2x49x72xbf16, #tpu.memory_space<vmem>>, %arg3: memref<2x72x8xbf16, #tpu.memory_space<vmem>>, %arg4: memref<1x2x49x8xf32, #tpu.memory_space<vmem>>) attributes {dimension_semantics = [#tpu.dimension_semantics<parallel>, #tpu.dimension_semantics<arbitrary>], iteration_bounds = array<i64: 2, 2>, scalar_prefetch = 0 : i64, scratch_operands = 0 : i64, tpu.core_type = #tpu.core_type<tc>, window_params = [{transform_indices = @transform_0, window_bounds = array<i64: 1, 2, 49, 72>}, {transform_indices = @transform_1, window_bounds = array<i64: 2, 72, 8>}, {transform_indices = @transform_2, window_bounds = array<i64: 1, 2, 49, 8>}]} {
    %c0 = arith.constant 0 : index
    %c0_0 = arith.constant 0 : index
    %c0_1 = arith.constant 0 : index
    %c0_2 = arith.constant 0 : index
    %0 = vector.load %arg2[%c0, %c0_0, %c0_1, %c0_2] : memref<1x2x49x72xbf16, #tpu.memory_space<vmem>>, vector<1x1x49x72xbf16>
    %1 = vector.shape_cast %0 : vector<1x1x49x72xbf16> to vector<49x72xbf16>
    %c0_3 = arith.constant 0 : index
    %c0_4 = arith.constant 0 : index
    %c0_5 = arith.constant 0 : index
    %2 = vector.load %arg3[%c0_3, %c0_4, %c0_5] : memref<2x72x8xbf16, #tpu.memory_space<vmem>>, vector<1x72x8xbf16>
    %3 = vector.shape_cast %2 : vector<1x72x8xbf16> to vector<72x8xbf16>
    %cst = arith.constant dense<0.000000e+00> : vector<49x8xf32>
    %4 = tpu.matmul %1, %3, %cst {dimension_numbers = #tpu.dot_dimension_numbers<[1], [0], [0], [1], [0, 0, 1, 1], [], []>} : vector<49x72xbf16>, vector<72x8xbf16>, vector<49x8xf32> -> vector<49x8xf32>
    %c0_6 = arith.constant 0 : index
    %c0_7 = arith.constant 0 : index
    %c0_8 = arith.constant 0 : index
    %c0_9 = arith.constant 0 : index
    %5 = vector.load %arg4[%c0_6, %c0_7, %c0_8, %c0_9] : memref<1x2x49x8xf32, #tpu.memory_space<vmem>>, vector<1x1x49x8xf32>
    %6 = vector.shape_cast %5 : vector<1x1x49x8xf32> to vector<49x8xf32>
    %7 = vector.shape_cast %4 : vector<49x8xf32> to vector<1x1x49x8xf32>
    tpu.vector_store %arg4[%c0_6, %c0_7, %c0_8, %c0_9], %7 {strides = array<i32>} : memref<1x2x49x8xf32, #tpu.memory_space<vmem>>, vector<1x1x49x8xf32>,
    %c0_10 = arith.constant 0 : index
    %c1 = arith.constant 1 : index
    %c0_11 = arith.constant 0 : index
    %c0_12 = arith.constant 0 : index
    %8 = vector.load %arg2[%c0_10, %c1, %c0_11, %c0_12] : memref<1x2x49x72xbf16, #tpu.memory_space<vmem>>, vector<1x1x49x72xbf16>
    %9 = vector.shape_cast %8 : vector<1x1x49x72xbf16> to vector<49x72xbf16>
    %c1_13 = arith.constant 1 : index
    %c0_14 = arith.constant 0 : index
    %c0_15 = arith.constant 0 : index
    %10 = vector.load %arg3[%c1_13, %c0_14, %c0_15] : memref<2x72x8xbf16, #tpu.memory_space<vmem>>, vector<1x72x8xbf16>
    %11 = vector.shape_cast %10 : vector<1x72x8xbf16> to vector<72x8xbf16>
    %cst_16 = arith.constant dense<0.000000e+00> : vector<49x8xf32>
    %12 = tpu.matmul %9, %11, %cst_16 {dimension_numbers = #tpu.dot_dimension_numbers<[1], [0], [0], [1], [0, 0, 1, 1], [], []>} : vector<49x72xbf16>, vector<72x8xbf16>, vector<49x8xf32> -> vector<49x8xf32>
    %c0_17 = arith.constant 0 : index
    %c1_18 = arith.constant 1 : index
    %c0_19 = arith.constant 0 : index
    %c0_20 = arith.constant 0 : index
    %13 = vector.load %arg4[%c0_17, %c1_18, %c0_19, %c0_20] : memref<1x2x49x8xf32, #tpu.memory_space<vmem>>, vector<1x1x49x8xf32>
    %14 = vector.shape_cast %13 : vector<1x1x49x8xf32> to vector<49x8xf32>
    %15 = vector.shape_cast %12 : vector<49x8xf32> to vector<1x1x49x8xf32>
    tpu.vector_store %arg4[%c0_17, %c1_18, %c0_19, %c0_20], %15 {strides = array<i32>} : memref<1x2x49x8xf32, #tpu.memory_space<vmem>>, vector<1x1x49x8xf32>,
    return
  }
  func.func @transform_0(%arg0: i32, %arg1: i32) -> (i32, i32, i32, i32) {
    %c0_i32 = arith.constant 0 : i32
    %c0_i32_0 = arith.constant 0 : i32
    %c0_i32_1 = arith.constant 0 : i32
    return %arg1, %arg0, %c0_i32, %c0_i32_0 : i32, i32, i32, i32
  }
  func.func @transform_1(%arg0: i32, %arg1: i32) -> (i32, i32, i32) {
    %c0_i32 = arith.constant 0 : i32
    %c0_i32_0 = arith.constant 0 : i32
    %c0_i32_1 = arith.constant 0 : i32
    return %arg0, %c0_i32, %c0_i32_0 : i32, i32, i32
  }
  func.func @transform_2(%arg0: i32, %arg1: i32) -> (i32, i32, i32, i32) {
    %c0_i32 = arith.constant 0 : i32
    %c0_i32_0 = arith.constant 0 : i32
    %c0_i32_1 = arith.constant 0 : i32
    return %arg1, %arg0, %c0_i32, %c0_i32_0 : i32, i32, i32, i32
  }
}

</mosaic_0001>

<llo_original>
// kernel: _lambda_.1
$region0: #{_lambda_.1}
  #allocation0 [shape = 'u32[]', space=smem, size = 0x4, offset = 0x4, fixed_abs, tag = 'smem constant byte address 0x4 - core index']
  #allocation1 [shape = 'u32[72,128]{1,0:T(1,128)}', space=vmem, size = 0x9000, scoped, tag = 'internal scratch']
  %s0 = inlined_call_operand.vmem [shape: bf16[2,4,49,72], index: 0, kind: input, shape index: {}]
  %s1 = inlined_call_operand.vmem [shape: bf16[4,72,8], index: 1, kind: input, shape index: {}]
  %s2 = inlined_call_operand.vmem [shape: f32[2,4,49,8], index: 2, kind: output, shape index: {}]
  %s3 = sld [smem:[#allocation0]]
  $region41: #{_lambda_.1} parent=0
    _
  %s5 = ssub.s32 1, %s3
  %s6 = scalar_select 0, %s5, %s3
  loop: start=0, step=1, limit=6
  $region2: #{_lambda_.1} parent=0 // loop_pre_header
    _
  $region3: #{_lambda_.1} parent=0 // loop_header
    %s8 = sphi 0, %s12
    %p9 = scmp.ge.s32.totalorder %s8, 6
    %s15 = sphi 0, %s27
    %s16 = sphi 0, %s23
    %s17 = sphi 0, %s15
    %s18 = sphi 0, %s16
    %s19 = sphi 0, %s17
    %s20 = sphi 0, %s18
    %s32 = sphi 0, %s34
    %s35 = sphi 0, %s32
    %s36 = sphi 0, %s35
    %s52 = sphi 0, %s36
    %s58 = sphi 0, %s60
    %s61 = sphi 0, %s58
    %s62 = sphi 0, %s61
    %s78 = sphi 0, %s62
    %s86 = sphi 0, %s88
    %s89 = sphi 0, %s86
    %s90 = sphi 0, %s89
    %s106 = sphi 0, %s90
  $region4: #{_lambda_.1} parent=0 // loop_header_branch
    %11 = sbr.rel (%p9) target = $region8
  $region5: #{_lambda_.1} parent=0 // loop_body
    %s13 = ssub.s32 %s8, 1
    %s14 = ssub.s32 %s8, 2
    %s21 = sadd.s32 1, %s16
    %p22 = scmp.ge.s32.totalorder %s21, 2
    %s23 = scalar_select %p22, 0, %s21
    %s24 = sadd.s32 1, %s15
    %s25 = scalar_select %p22, %s24, %s15
    %p26 = scmp.ge.s32.totalorder %s25, 2
    %s27 = scalar_select %p26, 0, %s25
    %s28 = ssub.s32 %s16, %s23
    %s29 = ssub.s32 %s15, %s27
    %s30 = sor.u32 %s28, %s29
    %p31 = scmp.eq.s32.totalorder %s30, 0
    %s33 = sadd.s32 %s32, 1
    %s34 = scalar_select %p31, %s32, %s33
    %p37 = pneg %p31
    %p38 = scmp.eq.s32.totalorder %s8, 3
    %p39 = por %p37, %p38
    %p40 = scmp.ne.s32.totalorder %s32, %s35
    %p41 = scmp.eq.s32.totalorder %s8, 0
    %p42 = por %p40, %p41
    %p43 = scmp.ne.s32.totalorder %s32, %s35
    %p44 = scmp.eq.s32.totalorder %s13, 3
    %p45 = por %p43, %p44
    %p46 = scmp.ne.s32.totalorder %s35, %s36
    %p47 = scmp.eq.s32.totalorder %s13, 0
    %p48 = por %p46, %p47
    %p49 = scmp.ne.s32.totalorder %s35, %s36
    %p50 = scmp.eq.s32.totalorder %s14, 3
    %p51 = por %p49, %p50
    %p53 = scmp.ne.s32.totalorder %s36, %s52
    %p54 = scmp.eq.s32.totalorder %s14, 0
    %p55 = por %p53, %p54
    %s56 = ssub.s32 %s15, %s27
    %p57 = scmp.eq.s32.totalorder %s56, 0
    %s59 = sadd.s32 %s58, 1
    %s60 = scalar_select %p57, %s58, %s59
    %p63 = pneg %p57
    %p64 = scmp.eq.s32.totalorder %s8, 3
    %p65 = por %p63, %p64
    %p66 = scmp.ne.s32.totalorder %s58, %s61
    %p67 = scmp.eq.s32.totalorder %s8, 0
    %p68 = por %p66, %p67
    %p69 = scmp.ne.s32.totalorder %s58, %s61
    %p70 = scmp.eq.s32.totalorder %s13, 3
    %p71 = por %p69, %p70
    %p72 = scmp.ne.s32.totalorder %s61, %s62
    %p73 = scmp.eq.s32.totalorder %s13, 0
    %p74 = por %p72, %p73
    %p75 = scmp.ne.s32.totalorder %s61, %s62
    %p76 = scmp.eq.s32.totalorder %s14, 3
    %p77 = por %p75, %p76
    %p79 = scmp.ne.s32.totalorder %s62, %s78
    %p80 = scmp.eq.s32.totalorder %s14, 0
    %p81 = por %p79, %p80
    %s82 = ssub.s32 %s16, %s23
    %s83 = ssub.s32 %s15, %s27
    %s84 = sor.u32 %s82, %s83
    %p85 = scmp.eq.s32.totalorder %s84, 0
    %s87 = sadd.s32 %s86, 1
    %s88 = scalar_select %p85, %s86, %s87
    %p91 = pneg %p85
    %p92 = scmp.eq.s32.totalorder %s8, 3
    %p93 = por %p91, %p92
    %p94 = scmp.ne.s32.totalorder %s86, %s89
    %p95 = scmp.eq.s32.totalorder %s8, 0
    %p96 = por %p94, %p95
    %p97 = scmp.ne.s32.totalorder %s86, %s89
    %p98 = scmp.eq.s32.totalorder %s13, 3
    %p99 = por %p97, %p98
    %p100 = scmp.ne.s32.totalorder %s89, %s90
    %p101 = scmp.eq.s32.totalorder %s13, 0
    %p102 = por %p100, %p101
    %p103 = scmp.ne.s32.totalorder %s89, %s90
    %p104 = scmp.eq.s32.totalorder %s14, 3
    %p105 = por %p103, %p104
    %p107 = scmp.ne.s32.totalorder %s90, %s106
    %p108 = scmp.eq.s32.totalorder %s14, 0
    %p109 = por %p107, %p108
    %p110 = scmp.le.s32.totalorder 1, %s8
    %p111 = scmp.lt.s32.totalorder %s8, 5
    %p112 = pnand %p110, %p111
    %p113 = pneg %p112
    // Predicated region
    $region9: #{_lambda_.1} parent=5 // pred_check
      _
    $region10: #{_lambda_.1} parent=5 // pred_check_branch
      %115 = sbr.rel (%p112) target = $region12
    $region11: #{_lambda_.1} parent=5 // pred_region
      %s116 = ssub.s32 %s8, 1
    $region12: #{_lambda_.1} parent=5 // pred_fallthru
      _
    %p117 = scmp.lt.s32.totalorder %s8, 4
    // Predicated region
    $region13: #{_lambda_.1} parent=5 // pred_check
      %p118 = pneg %p117
    $region14: #{_lambda_.1} parent=5 // pred_check_branch
      %120 = sbr.rel (%p118) target = $region16
    $region15: #{_lambda_.1} parent=5 // pred_region
      // Predicated region
      $region17: #{_lambda_.1} parent=15 // pred_check
        %p121 = pneg %p42
      $region18: #{_lambda_.1} parent=15 // pred_check_branch
        %123 = sbr.rel (%p121) target = $region20
      $region19: #{_lambda_.1} parent=15 // pred_region
        %s124 = smul.u32 2, %s15
        %p125 = scmp.lt.s32.totalorder %s16, 1
        %s126 = scalar_select %p125, %s16, 1
        %p127 = scmp.lt.s32.totalorder %s124, 3
        %s128 = scalar_select %p127, %s124, 3
        %s129 = smul.addr %s128, 7
        %s130 = smul.addr %s126, 28
        %s131 = sadd.s32 %s129, %s130
        %s132 = smul.addr %s131, 4
        %s133 = scalar_lea.vmem %s0, %s132
        %s134 = smul.u32 2, %s15
      $region20: #{_lambda_.1} parent=15 // pred_fallthru
        _
      // Predicated region
      $region21: #{_lambda_.1} parent=15 // pred_check
        %p135 = pneg %p68
      $region22: #{_lambda_.1} parent=15 // pred_check_branch
        %137 = sbr.rel (%p135) target = $region24
      $region23: #{_lambda_.1} parent=15 // pred_region
        %s138 = smul.u32 2, %s15
        %p139 = scmp.lt.s32.totalorder %s138, 3
        %s140 = scalar_select %p139, %s138, 3
        %s141 = smul.addr %s140, 9
        %s142 = smul.addr %s141, 4
        %s143 = scalar_lea.vmem %s1, %s142
        %s144 = smul.u32 2, %s15
      $region24: #{_lambda_.1} parent=15 // pred_fallthru
        _
    $region16: #{_lambda_.1} parent=5 // pred_fallthru
      _
    %p145 = scmp.le.s32.totalorder 1, %s8
    %p146 = scmp.lt.s32.totalorder %s8, 5
    %p147 = pnand %p145, %p146
    %p148 = pneg %p147
    // Predicated region
    $region25: #{_lambda_.1} parent=5 // pred_check
      _
    $region26: #{_lambda_.1} parent=5 // pred_check_branch
      %150 = sbr.rel (%p147) target = $region28
    $region27: #{_lambda_.1} parent=5 // pred_region
      %s151 = ssub.s32 %s8, 1
      %s152 = smul.u32 2, %s17
      %p153 = scmp.lt.s32.totalorder %s18, 1
      %s154 = scalar_select %p153, %s18, 1
      %p155 = scmp.lt.s32.totalorder %s152, 3
      %s156 = scalar_select %p155, %s152, 3
      %s157 = smul.addr %s156, 7
      %s158 = smul.addr %s154, 28
      %s159 = sadd.s32 %s157, %s158
      %s160 = smul.addr %s159, 4
      %s161 = scalar_lea.vmem %s0, %s160
      %p162 = pneg %p48
      %p163 = pneg %p45
      %s164 = smul.u32 2, %s17
      %p165 = scmp.lt.s32.totalorder %s164, 3
      %s166 = scalar_select %p165, %s164, 3
      %s167 = smul.addr %s166, 9
      %s168 = smul.addr %s167, 4
      %s169 = scalar_lea.vmem %s1, %s168
      %p170 = pneg %p74
      %p171 = pneg %p71
      %p172 = pneg %p102
      %p173 = pneg %p99
      %s174 = smul.u32 2, %s17
      %p175 = scmp.lt.s32.totalorder %s18, 1
      %s176 = scalar_select %p175, %s18, 1
      %p177 = scmp.lt.s32.totalorder %s174, 3
      %s178 = scalar_select %p177, %s174, 3
      %s179 = smul.addr %s178, 7
      %s180 = smul.addr %s176, 28
      %s181 = sadd.s32 %s179, %s180
      %s182 = smul.addr %s181, 8
      %s183 = scalar_lea.vmem %s2, %s182
      %s184 = smul.u32 2, %s17
      %p185 = scmp.lt.s32.totalorder %s18, 1
      %s186 = scalar_select %p185, %s18, 1
      %p187 = scmp.lt.s32.totalorder %s184, 3
      %s188 = scalar_select %p187, %s184, 3
      %s189 = smul.addr %s188, 7
      %s190 = smul.addr %s186, 28
      %s191 = sadd.s32 %s189, %s190
      %s192 = smul.addr %s191, 4
      %s193 = scalar_lea.vmem %s0, %s192
      %s194 = smul.u32 2, %s17
      %s195 = smul.u32 2, %s17
      %p196 = scmp.lt.s32.totalorder %s195, 3
      %s197 = scalar_select %p196, %s195, 3
      %s198 = smul.addr %s197, 9
      %s199 = smul.addr %s198, 4
      %s200 = scalar_lea.vmem %s1, %s199
      %s201 = smul.u32 2, %s17
      %s202 = smul.u32 2, %s17
      %p203 = scmp.lt.s32.totalorder %s18, 1
      %s204 = scalar_select %p203, %s18, 1
      %p205 = scmp.lt.s32.totalorder %s202, 3
      %s206 = scalar_select %p205, %s202, 3
      %s207 = smul.addr %s206, 7
      %s208 = smul.addr %s204, 28
      %s209 = sadd.s32 %s207, %s208
      %s210 = smul.addr %s209, 8
      %s211 = scalar_lea.vmem %s2, %s210
      %s212 = smul.u32 2, %s17
      %v214 = vld [vmem:[%s193] sm:$0xf]
      %v215 = vld [vmem:[%s193 + $0x4] sm:$0xf]
      %v216 = vld [vmem:[%s193 + $0x8] sm:$0xf]
      %v217 = vld [vmem:[%s193 + $0xc] sm:$0xf]
      %v218 = vld [vmem:[%s193 + $0x10] sm:$0xf]
      %v219 = vld [vmem:[%s193 + $0x14] sm:$0xf]
      %v220 = vld [vmem:[%s193 + $0x18] sm:$0x1]
      %v221 = vld [vmem:[%s200] sm:$0xf]
      %v222 = vld [vmem:[%s200 + $0x4] sm:$0xf]
      %v223 = vld [vmem:[%s200 + $0x8] sm:$0xf]
      %v224 = vld [vmem:[%s200 + $0xc] sm:$0xf]
      %v225 = vld [vmem:[%s200 + $0x10] sm:$0xf]
      %v226 = vld [vmem:[%s200 + $0x14] sm:$0xf]
      %v227 = vld [vmem:[%s200 + $0x18] sm:$0xf]
      %v228 = vld [vmem:[%s200 + $0x1c] sm:$0xf]
      %v229 = vld [vmem:[%s200 + $0x20] sm:$0xf]
      %v237 = vunpack.c.l.b16 %v214
      %v238 = vunpack.c.l.b16 %v215
      %v239 = vunpack.c.l.b16 %v216
      %v240 = vunpack.c.l.b16 %v217
      %v241 = vunpack.c.l.b16 %v218
      %v242 = vunpack.c.l.b16 %v219
      %v243 = vunpack.c.l.b16 %v220
      %v244 = vpack.c.b16 %v238, %v237
      %v245 = vpack.c.b16 %v240, %v239
      %v246 = vpack.c.b16 %v242, %v241
      %v247 = vpack.c.b16 %v243, %v243
      %v257 = vunpack.c.l.b16 %v221
      %v258 = vunpack.c.l.b16 %v222
      %v259 = vunpack.c.l.b16 %v223
      %v260 = vunpack.c.l.b16 %v224
      %v261 = vunpack.c.l.b16 %v225
      %v262 = vunpack.c.l.b16 %v226
      %v263 = vunpack.c.l.b16 %v227
      %v264 = vunpack.c.l.b16 %v228
      %v265 = vunpack.c.l.b16 %v229
      %v266 = vpack.c.b16 %v258, %v257
      %v267 = vpack.c.b16 %v260, %v259
      %v268 = vpack.c.b16 %v262, %v261
      %v269 = vpack.c.b16 %v264, %v263
      %v270 = vpack.c.b16 %v265, %v265
      %vm275 = vcmask 588800
      %v277 = vsel %vm275, %v244, 0
      %v280 = vsel %vm275, %v245, 0
      %v283 = vsel %vm275, %v246, 0
      %v286 = vsel %vm275, %v247, 0
      %vm288 = vcmask 1043456
      %v290 = vsel %vm288, %v270, 0
      %292 = vmatpush.bf16.msra.mxu0 0
      %293 = vmatpush.bf16.msra.mxu0 0
      %294 = vmatpush.bf16.msra.mxu0 0
      %295 = vmatpush.bf16.msra.mxu0 %v290
      %296 = vmatpush.bf16.msra.mxu0 %v269
      %297 = vmatpush.bf16.msra.mxu0 %v268
      %298 = vmatpush.bf16.msra.mxu0 %v267
      %299 = vmatpush.bf16.msra.mxu0 %v266
      %300 = vmatmul.bf16.gmra.mxu0 %v277
      %v301 = vpop.f32.mrf.mxu0
      %v302 = vadd.f32 0.0, %v301
      %v303 = vpop.f32.mrf.mxu0
      %v304 = vadd.f32 0.0, %v303
      %305 = vmatmul.bf16.gmra.mxu0 %v280
      %v306 = vpop.f32.mrf.mxu0
      %v307 = vadd.f32 0.0, %v306
      %v308 = vpop.f32.mrf.mxu0
      %v309 = vadd.f32 0.0, %v308
      %310 = vmatmul.bf16.gmra.mxu0 %v283
      %v311 = vpop.f32.mrf.mxu0
      %v312 = vadd.f32 0.0, %v311
      %v313 = vpop.f32.mrf.mxu0
      %v314 = vadd.f32 0.0, %v313
      %315 = vmatmul.bf16.gmra.mxu0 %v286
      %v316 = vpop.f32.mrf.mxu0
      %v317 = vadd.f32 0.0, %v316
      %v318 = vpop.f32.mrf.mxu0
      %319 = vdwg.mxu0
      %vm320 = vcmask 64512
      %321 = vst.msk [vmem:[%s211] sm:$0xff] %vm320, %v302
      %322 = vst.msk [vmem:[%s211 + $0x8] sm:$0xff] %vm320, %v304
      %323 = vst.msk [vmem:[%s211 + $0x10] sm:$0xff] %vm320, %v307
      %324 = vst.msk [vmem:[%s211 + $0x18] sm:$0xff] %vm320, %v309
      %325 = vst.msk [vmem:[%s211 + $0x20] sm:$0xff] %vm320, %v312
      %326 = vst.msk [vmem:[%s211 + $0x28] sm:$0xff] %vm320, %v314
      %vm327 = vcmask 57344
      %328 = vst.msk [vmem:[%s211 + $0x30] sm:$0x1] %vm327, %v317
      %s329 = scalar_lea.vmem %s193, 28
      %v330 = vld [vmem:[%s329] sm:$0xf]
      %v331 = vld [vmem:[%s329 + $0x4] sm:$0xf]
      %v332 = vld [vmem:[%s329 + $0x8] sm:$0xf]
      %v333 = vld [vmem:[%s329 + $0xc] sm:$0xf]
      %v334 = vld [vmem:[%s329 + $0x10] sm:$0xf]
      %v335 = vld [vmem:[%s329 + $0x14] sm:$0xf]
      %v336 = vld [vmem:[%s329 + $0x18] sm:$0x1]
      %s337 = scalar_lea.vmem %s200, 36
      %v338 = vld [vmem:[%s337] sm:$0xf]
      %v339 = vld [vmem:[%s337 + $0x4] sm:$0xf]
      %v340 = vld [vmem:[%s337 + $0x8] sm:$0xf]
      %v341 = vld [vmem:[%s337 + $0xc] sm:$0xf]
      %v342 = vld [vmem:[%s337 + $0x10] sm:$0xf]
      %v343 = vld [vmem:[%s337 + $0x14] sm:$0xf]
      %v344 = vld [vmem:[%s337 + $0x18] sm:$0xf]
      %v345 = vld [vmem:[%s337 + $0x1c] sm:$0xf]
      %v346 = vld [vmem:[%s337 + $0x20] sm:$0xf]
      %v354 = vunpack.c.l.b16 %v330
      %v355 = vunpack.c.l.b16 %v331
      %v356 = vunpack.c.l.b16 %v332
      %v357 = vunpack.c.l.b16 %v333
      %v358 = vunpack.c.l.b16 %v334
      %v359 = vunpack.c.l.b16 %v335
      %v360 = vunpack.c.l.b16 %v336
      %v361 = vpack.c.b16 %v355, %v354
      %v362 = vpack.c.b16 %v357, %v356
      %v363 = vpack.c.b16 %v359, %v358
      %v364 = vpack.c.b16 %v360, %v360
      %v374 = vunpack.c.l.b16 %v338
      %v375 = vunpack.c.l.b16 %v339
      %v376 = vunpack.c.l.b16 %v340
      %v377 = vunpack.c.l.b16 %v341
      %v378 = vunpack.c.l.b16 %v342
      %v379 = vunpack.c.l.b16 %v343
      %v380 = vunpack.c.l.b16 %v344
      %v381 = vunpack.c.l.b16 %v345
      %v382 = vunpack.c.l.b16 %v346
      %v383 = vpack.c.b16 %v375, %v374
      %v384 = vpack.c.b16 %v377, %v376
      %v385 = vpack.c.b16 %v379, %v378
      %v386 = vpack.c.b16 %v381, %v380
      %v387 = vpack.c.b16 %v382, %v382
      %v393 = vsel %vm275, %v361, 0
      %v396 = vsel %vm275, %v362, 0
      %v399 = vsel %vm275, %v363, 0
      %v402 = vsel %vm275, %v364, 0
      %v405 = vsel %vm288, %v387, 0
      %407 = vmatpush.bf16.msra.mxu0 0
      %408 = vmatpush.bf16.msra.mxu0 0
      %409 = vmatpush.bf16.msra.mxu0 0
      %410 = vmatpush.bf16.msra.mxu0 %v405
      %411 = vmatpush.bf16.msra.mxu0 %v386
      %412 = vmatpush.bf16.msra.mxu0 %v385
      %413 = vmatpush.bf16.msra.mxu0 %v384
      %414 = vmatpush.bf16.msra.mxu0 %v383
      %415 = vmatmul.bf16.gmra.mxu0 %v393
      %v416 = vpop.f32.mrf.mxu0
      %v417 = vadd.f32 0.0, %v416
      %v418 = vpop.f32.mrf.mxu0
      %v419 = vadd.f32 0.0, %v418
      %420 = vmatmul.bf16.gmra.mxu0 %v396
      %v421 = vpop.f32.mrf.mxu0
      %v422 = vadd.f32 0.0, %v421
      %v423 = vpop.f32.mrf.mxu0
      %v424 = vadd.f32 0.0, %v423
      %425 = vmatmul.bf16.gmra.mxu0 %v399
      %v426 = vpop.f32.mrf.mxu0
      %v427 = vadd.f32 0.0, %v426
      %v428 = vpop.f32.mrf.mxu0
      %v429 = vadd.f32 0.0, %v428
      %430 = vmatmul.bf16.gmra.mxu0 %v402
      %v431 = vpop.f32.mrf.mxu0
      %v432 = vadd.f32 0.0, %v431
      %v433 = vpop.f32.mrf.mxu0
      %434 = vdwg.mxu0
      %s435 = scalar_lea.vmem %s211, 56
      %436 = vst.msk [vmem:[%s435] sm:$0xff] %vm320, %v417
      %437 = vst.msk [vmem:[%s435 + $0x8] sm:$0xff] %vm320, %v419
      %438 = vst.msk [vmem:[%s435 + $0x10] sm:$0xff] %vm320, %v422
      %439 = vst.msk [vmem:[%s435 + $0x18] sm:$0xff] %vm320, %v424
      %440 = vst.msk [vmem:[%s435 + $0x20] sm:$0xff] %vm320, %v427
      %441 = vst.msk [vmem:[%s435 + $0x28] sm:$0xff] %vm320, %v429
      %442 = vst.msk [vmem:[%s435 + $0x30] sm:$0x1] %vm327, %v432
      %s443 = smul.u32 2, %s17
      %p444 = scmp.lt.s32.totalorder %s18, 1
      %s445 = scalar_select %p444, %s18, 1
      %p446 = scmp.lt.s32.totalorder %s443, 3
      %s447 = scalar_select %p446, %s443, 3
      %s448 = smul.addr %s447, 7
      %s449 = smul.addr %s445, 28
      %s450 = sadd.s32 %s448, %s449
      %s451 = smul.addr %s450, 8
      %s452 = scalar_lea.vmem %s2, %s451
      // Predicated region
      $region29: #{_lambda_.1} parent=27 // pred_check
        %p453 = pneg %p99
      $region30: #{_lambda_.1} parent=27 // pred_check_branch
        %455 = sbr.rel (%p453) target = $region32
      $region31: #{_lambda_.1} parent=27 // pred_region
        %s456 = smul.u32 2, %s17
      $region32: #{_lambda_.1} parent=27 // pred_fallthru
        _
    $region28: #{_lambda_.1} parent=5 // pred_fallthru
      _
    %p457 = scmp.le.s32.totalorder 2, %s8
    // Predicated region
    $region33: #{_lambda_.1} parent=5 // pred_check
      %p458 = pneg %p457
    $region34: #{_lambda_.1} parent=5 // pred_check_branch
      %460 = sbr.rel (%p458) target = $region36
    $region35: #{_lambda_.1} parent=5 // pred_region
      %s461 = ssub.s32 %s8, 2
      // Predicated region
      $region37: #{_lambda_.1} parent=35 // pred_check
        %p462 = pneg %p105
      $region38: #{_lambda_.1} parent=35 // pred_check_branch
        %464 = sbr.rel (%p462) target = $region40
      $region39: #{_lambda_.1} parent=35 // pred_region
        %s465 = smul.u32 2, %s19
        %p466 = scmp.lt.s32.totalorder %s20, 1
        %s467 = scalar_select %p466, %s20, 1
        %p468 = scmp.lt.s32.totalorder %s465, 3
        %s469 = scalar_select %p468, %s465, 3
        %s470 = smul.addr %s469, 7
        %s471 = smul.addr %s467, 28
        %s472 = sadd.s32 %s470, %s471
        %s473 = smul.addr %s472, 8
        %s474 = scalar_lea.vmem %s2, %s473
      $region40: #{_lambda_.1} parent=35 // pred_fallthru
        _
    $region36: #{_lambda_.1} parent=5 // pred_fallthru
      _
  $region6: #{_lambda_.1} parent=0 // loop_footer
    %s12 = sadd.s32 1, %s8
  $region7: #{_lambda_.1} parent=0 // loop_footer_branch
    %7 = sbr.rel target = $region3
  $region8: #{_lambda_.1} parent=0 // loop_exit
    _

</llo_original>
